<compile_context>
chip_gen: v5e
topology: v5e:2x2
jax: 0.10.0
libtpu: 0.0.40
codegen_flags: <defaults>
</compile_context>

<pallas_src>
import functools

import jax
import jax.numpy as jnp
from jax.experimental import pallas as pl
from jax.experimental.pallas import tpu as pltpu

EP = 1e-9
BIT_RANGE = 8
QB = float(2 ** (BIT_RANGE - 1))
LN_EPS = 1e-5  # PyTorch nn.LayerNorm default


def _round_up(x, m):
    return (x + m - 1) // m * m


def bitlinear_layer_kernel(x_ref, wq_ref, b_ref, lnw_ref, lnb_ref,
                           fan_in_ref, scale_ref, o_ref, h_ref, *, batch):
    """One grid step == one BitLinear layer; activation persists in VMEM."""
    l = pl.program_id(0)
    n_layers = pl.num_programs(0)
    Bp, F = h_ref.shape

    # Load the input block into the persistent activation scratch (once).
    @pl.when(l == 0)
    def _():
        h_ref[...] = x_ref[...].astype(jnp.float32)

    h = h_ref[...]                                        # (Bp, F) f32

    # --- masked LayerNorm over the first `fan_in` features -----------------
    fan_in = fan_in_ref[l]                                # SMEM scalar (int32)
    inv_n = 1.0 / fan_in.astype(jnp.float32)
    col = jax.lax.broadcasted_iota(jnp.int32, (1, F), 1)
    col_mask = (col < fan_in).astype(jnp.float32)
    mu = jnp.sum(h, axis=-1, keepdims=True) * inv_n       # padded cols are 0
    c = (h - mu) * col_mask
    var = jnp.sum(c * c, axis=-1, keepdims=True) * inv_n
    x_ln = c * jax.lax.rsqrt(var + LN_EPS)
    x_ln = x_ln * lnw_ref[0] + lnb_ref[0]                 # zero-padded affine

    if Bp != batch:                                       # static (trace-time)
        row = jax.lax.broadcasted_iota(jnp.int32, (Bp, 1), 0)
        x_ln = x_ln * (row < batch).astype(jnp.float32)   # keep gamma exact

    # --- activation quantization (whole-tensor abs-max) ---------------------
    gamma = jnp.max(jnp.abs(x_ln))
    inv_g = QB / jnp.maximum(gamma, EP)                   # eps-protected divide
    x_q = jnp.clip(x_ln * inv_g, -QB + EP, QB - EP)

    # --- MXU matmul: int8 ternary weights streamed from HBM, bf16 operands --
    w = wq_ref[0].astype(jnp.bfloat16)                    # {-1,0,1}: lossless
    y = jnp.dot(x_q.astype(jnp.bfloat16), w,
                preferred_element_type=jnp.float32)

    # --- dequant + bias:  scale_ref[l] = beta_l / QB (precomputed) ----------
    h_new = y * (scale_ref[l] * gamma) + b_ref[0]
    h_ref[...] = h_new

    @pl.when(l == n_layers - 1)
    def _():
        o_ref[...] = h_new


def init_simple_model(key, n_in, n_out, n_layers):
    """nn.Linear-style init (uniform +/- 1/sqrt(fan_in)); LayerNorm w=1, b=0."""
    params = []
    for i in range(n_layers):
        fan_in = n_in if i == 0 else n_out
        key, kw, kb = jax.random.split(key, 3)
        bound = 1.0 / jnp.sqrt(float(fan_in))
        w = jax.random.uniform(kw, (n_out, fan_in), jnp.float32, -bound, bound)
        b = jax.random.uniform(kb, (1, n_out), jnp.float32, -bound, bound)
        lnw = jnp.ones((1, fan_in), jnp.float32)
        lnb = jnp.zeros((1, fan_in), jnp.float32)
        params.append((w, b, lnw, lnb))
    return params


def prepare_params(params, n_in, n_out):
    """One-time host-side weight binarization + lane-dense padding + stacking."""
    n_layers = len(params)
    F = _round_up(max(n_in, n_out), 128)
    wq_s, b_s, lnw_s, lnb_s, scale_s, fan_s = [], [], [], [], [], []
    for i, (w, b, lnw, lnb) in enumerate(params):
        fan_in = w.shape[1]
        alpha = jnp.mean(w)
        w_q = jnp.sign(w - alpha)                          # {-1, 0, +1}
        beta = jnp.mean(jnp.abs(w))
        wq_t = jnp.zeros((F, F), jnp.int8).at[:fan_in, :n_out].set(
            w_q.T.astype(jnp.int8))                        # (fan_in, n_out), int8
        b_p = jnp.zeros((1, F), jnp.float32).at[:, :n_out].set(b)
        lnw_p = jnp.zeros((1, F), jnp.float32).at[:, :fan_in].set(lnw)
        lnb_p = jnp.zeros((1, F), jnp.float32).at[:, :fan_in].set(lnb)
        wq_s.append(wq_t); b_s.append(b_p)
        lnw_s.append(lnw_p); lnb_s.append(lnb_p)
        scale_s.append(beta / QB)
        fan_s.append(fan_in)
    return {
        "wq": jnp.stack(wq_s),                             # (L, F, F) int8
        "bias": jnp.stack(b_s),                            # (L, 1, F) f32
        "lnw": jnp.stack(lnw_s),                           # (L, 1, F) f32
        "lnb": jnp.stack(lnb_s),                           # (L, 1, F) f32
        "fan_in": jnp.asarray(fan_s, jnp.int32),           # (L,) int32  (SMEM)
        "scale": jnp.asarray(scale_s, jnp.float32),        # (L,) f32    (SMEM)
    }


@functools.partial(jax.jit, static_argnames=("n_in", "n_out"))
def simple_model_forward(x, packed, *, n_in, n_out):
    B = x.shape[0]
    n_layers, F, _ = packed["wq"].shape
    Bp = _round_up(B, 8)
    x_p = jnp.zeros((Bp, F), jnp.float32).at[:B, :n_in].set(x)

    kernel = functools.partial(bitlinear_layer_kernel, batch=B)

    # Explicit VMEM budget: double-buffered int8 weights + small per-layer
    # vectors + input/output/activation, plus headroom.  Capped well below the
    # smallest physical VMEM (v7x: 64 MiB).
    vmem_bytes = (2 * F * F * 1            # wq, double-buffered, int8
                  + 2 * 3 * F * 4          # bias / ln weight / ln bias
                  + 4 * Bp * F * 4         # x in + out pipeline buffers
                  + Bp * F * 4             # persistent activation scratch
                  + (4 << 20))             # headroom
    vmem_limit = int(min(max(vmem_bytes, 8 << 20), 48 << 20))

    out_p = pl.pallas_call(
        kernel,
        out_shape=jax.ShapeDtypeStruct((Bp, F), jnp.float32),
        grid=(n_layers,),
        in_specs=[
            pl.BlockSpec((Bp, F), lambda l: (0, 0)),              # x (fetched once)
            pl.BlockSpec((1, F, F), lambda l: (l, 0, 0)),         # w_q int8, streamed
            pl.BlockSpec((1, 1, F), lambda l: (l, 0, 0)),         # bias
            pl.BlockSpec((1, 1, F), lambda l: (l, 0, 0)),         # ln weight
            pl.BlockSpec((1, 1, F), lambda l: (l, 0, 0)),         # ln bias
            pl.BlockSpec(memory_space=pltpu.MemorySpace.SMEM),    # fan_in table
            pl.BlockSpec(memory_space=pltpu.MemorySpace.SMEM),    # beta/QB scalars
        ],
        out_specs=pl.BlockSpec((Bp, F), lambda l: (0, 0)),
        scratch_shapes=[pltpu.VMEM((Bp, F), jnp.float32)],        # persistent h
        compiler_params=pltpu.CompilerParams(
            dimension_semantics=("arbitrary",),                   # layers are sequential
            vmem_limit_bytes=vmem_limit),
    )(x_p, packed["wq"], packed["bias"], packed["lnw"], packed["lnb"],
      packed["fan_in"], packed["scale"])

    return out_p[:B, :n_out]


if __name__ == "__main__":
    n_in, n_out, n_layers = 32, 32, 3
    batch = 8

    key = jax.random.PRNGKey(0)
    key, kx = jax.random.split(key)
    x = jax.random.normal(kx, (batch, n_in), jnp.float32)

    params = init_simple_model(key, n_in, n_out, n_layers)
    packed = prepare_params(params, n_in, n_out)           # one-time weight quant

    out = simple_model_forward(x, packed, n_in=n_in, n_out=n_out)
    out = jax.block_until_ready(out)

    assert out.shape == (batch, n_out), out.shape
    assert bool(jnp.all(jnp.isfinite(out)))
    print("KERNEL_OK")
</pallas_src>

<mosaic_0001>
module attributes {stable_mosaic.version = 11 : i64} {
  func.func @bitlinear_layer_kernel(%arg0: i32, %arg1: memref<8x128xf32, #tpu.memory_space<vmem>>, %arg2: memref<1x128x128xi8, #tpu.memory_space<vmem>>, %arg3: memref<1x1x128xf32, #tpu.memory_space<vmem>>, %arg4: memref<1x1x128xf32, #tpu.memory_space<vmem>>, %arg5: memref<1x1x128xf32, #tpu.memory_space<vmem>>, %arg6: memref<3xi32, #tpu.memory_space<smem>>, %arg7: memref<3xf32, #tpu.memory_space<smem>>, %arg8: memref<8x128xf32, #tpu.memory_space<vmem>>, %arg9: memref<8x128xf32, #tpu.memory_space<vmem>>) attributes {dimension_semantics = [#tpu.dimension_semantics<arbitrary>], iteration_bounds = array<i64: 3>, scalar_prefetch = 0 : i64, scratch_operands = 1 : i64, tpu.core_type = #tpu.core_type<tc>, window_params = [{pipeline_mode = #tpu.pipeline_mode<synchronous>, transform_indices = @transform_0, window_bounds = array<i64: 8, 128>}, {transform_indices = @transform_1, window_bounds = array<i64: 1, 128, 128>}, {transform_indices = @transform_2, window_bounds = array<i64: 1, 1, 128>}, {transform_indices = @transform_3, window_bounds = array<i64: 1, 1, 128>}, {transform_indices = @transform_4, window_bounds = array<i64: 1, 1, 128>}, {transform_indices = @transform_5, window_bounds = array<i64: 3>}, {transform_indices = @transform_6, window_bounds = array<i64: 3>}, {pipeline_mode = #tpu.pipeline_mode<synchronous>, transform_indices = @transform_7, window_bounds = array<i64: 8, 128>}]} {
    %c0_i32 = arith.constant 0 : i32
    %0 = arith.cmpi eq, %arg0, %c0_i32 : i32
    %1 = arith.extui %0 : i1 to i32
    %c0_i32_0 = arith.constant 0 : i32
    %2 = arith.cmpi ne, %1, %c0_i32_0 : i32
    scf.if %2 {
      %c0_26 = arith.constant 0 : index
      %c0_27 = arith.constant 0 : index
      %70 = vector.load %arg1[%c0_26, %c0_27] : memref<8x128xf32, #tpu.memory_space<vmem>>, vector<8x128xf32>
      %c0_28 = arith.constant 0 : index
      %c0_29 = arith.constant 0 : index
      %71 = vector.load %arg9[%c0_28, %c0_29] : memref<8x128xf32, #tpu.memory_space<vmem>>, vector<8x128xf32>
      tpu.vector_store %arg9[%c0_28, %c0_29], %70 {strides = array<i32>} : memref<8x128xf32, #tpu.memory_space<vmem>>, vector<8x128xf32>,
    } else {
    }
    %c0 = arith.constant 0 : index
    %c0_1 = arith.constant 0 : index
    %3 = vector.load %arg9[%c0, %c0_1] : memref<8x128xf32, #tpu.memory_space<vmem>>, vector<8x128xf32>
    %4 = arith.index_cast %arg0 : i32 to index
    %5 = memref.load %arg6[%4] : memref<3xi32, #tpu.memory_space<smem>>
    %6 = arith.sitofp %5 : i32 to f32
    %cst = arith.constant 1.000000e+00 : f32
    %7 = arith.divf %cst, %6 : f32
    %8 = tpu.iota {dimensions = array<i32: 1>} : vector<1x128xi32>
    %9 = vector.broadcast %5 : i32 to vector<1x128xi32>
    %10 = arith.cmpi slt, %8, %9 : vector<1x128xi32>
    %11 = arith.extui %10 : vector<1x128xi1> to vector<1x128xi32>
    %12 = arith.sitofp %11 : vector<1x128xi32> to vector<1x128xf32>
    %cst_2 = arith.constant dense<0.000000e+00> : vector<8xf32>
    %13 = vector.multi_reduction <add>, %3, %cst_2 [1] : vector<8x128xf32> to vector<8xf32>
    %14 = vector.shape_cast %13 : vector<8xf32> to vector<8x1xf32>
    %15 = vector.broadcast %7 : f32 to vector<8x1xf32>
    %16 = arith.mulf %14, %15 : vector<8x1xf32>
    %17 = vector.broadcast %16 : vector<8x1xf32> to vector<8x128xf32>
    %18 = arith.subf %3, %17 : vector<8x128xf32>
    %19 = vector.broadcast %12 : vector<1x128xf32> to vector<8x128xf32>
    %20 = arith.mulf %18, %19 : vector<8x128xf32>
    %21 = arith.mulf %20, %20 : vector<8x128xf32>
    %cst_3 = arith.constant dense<0.000000e+00> : vector<8xf32>
    %22 = vector.multi_reduction <add>, %21, %cst_3 [1] : vector<8x128xf32> to vector<8xf32>
    %23 = vector.shape_cast %22 : vector<8xf32> to vector<8x1xf32>
    %24 = vector.broadcast %7 : f32 to vector<8x1xf32>
    %25 = arith.mulf %23, %24 : vector<8x1xf32>
    %cst_4 = arith.constant 9.99999974E-6 : f32
    %26 = vector.broadcast %cst_4 : f32 to vector<8x1xf32>
    %27 = arith.addf %25, %26 : vector<8x1xf32>
    %28 = math.rsqrt %27 : vector<8x1xf32>
    %29 = vector.broadcast %28 : vector<8x1xf32> to vector<8x128xf32>
    %30 = arith.mulf %20, %29 : vector<8x128xf32>
    %c0_5 = arith.constant 0 : index
    %c0_6 = arith.constant 0 : index
    %c0_7 = arith.constant 0 : index
    %31 = vector.load %arg4[%c0_5, %c0_6, %c0_7] : memref<1x1x128xf32, #tpu.memory_space<vmem>>, vector<1x1x128xf32>
    %32 = vector.shape_cast %31 : vector<1x1x128xf32> to vector<1x128xf32>
    %33 = vector.broadcast %32 : vector<1x128xf32> to vector<8x128xf32>
    %34 = arith.mulf %30, %33 : vector<8x128xf32>
    %c0_8 = arith.constant 0 : index
    %c0_9 = arith.constant 0 : index
    %c0_10 = arith.constant 0 : index
    %35 = vector.load %arg5[%c0_8, %c0_9, %c0_10] : memref<1x1x128xf32, #tpu.memory_space<vmem>>, vector<1x1x128xf32>
    %36 = vector.shape_cast %35 : vector<1x1x128xf32> to vector<1x128xf32>
    %37 = vector.broadcast %36 : vector<1x128xf32> to vector<8x128xf32>
    %38 = arith.addf %34, %37 : vector<8x128xf32>
    %39 = math.absf %38 : vector<8x128xf32>
    %40 = vector.shape_cast %39 : vector<8x128xf32> to vector<1x8x128xf32>
    %cst_11 = arith.constant dense<0xFF800000> : vector<1xf32>
    %41 = vector.multi_reduction <maximumf>, %40, %cst_11 [1, 2] : vector<1x8x128xf32> to vector<1xf32>
    %42 = vector.shape_cast %41 : vector<1xf32> to vector<1x1x1xf32>
    %43 = vector.extract %42[0, 0, 0] : f32 from vector<1x1x1xf32>
    %cst_12 = arith.constant 9.99999971E-10 : f32
    %44 = arith.maximumf %43, %cst_12 : f32
    %cst_13 = arith.constant 1.280000e+02 : f32
    %45 = arith.divf %cst_13, %44 : f32
    %46 = vector.broadcast %45 : f32 to vector<8x128xf32>
    %47 = arith.mulf %38, %46 : vector<8x128xf32>
    %cst_14 = arith.constant -1.280000e+02 : f32
    %cst_15 = arith.constant 1.280000e+02 : f32
    %48 = vector.broadcast %cst_14 : f32 to vector<8x128xf32>
    %49 = arith.maximumf %48, %47 : vector<8x128xf32>
    %50 = vector.broadcast %cst_15 : f32 to vector<8x128xf32>
    %51 = arith.minimumf %50, %49 : vector<8x128xf32>
    %c0_16 = arith.constant 0 : index
    %c0_17 = arith.constant 0 : index
    %c0_18 = arith.constant 0 : index
    %52 = vector.load %arg2[%c0_16, %c0_17, %c0_18] : memref<1x128x128xi8, #tpu.memory_space<vmem>>, vector<1x128x128xi8>
    %53 = vector.shape_cast %52 : vector<1x128x128xi8> to vector<128x128xi8>
    %54 = arith.sitofp %53 : vector<128x128xi8> to vector<128x128xbf16>
    %55 = arith.truncf %51 : vector<8x128xf32> to vector<8x128xbf16>
    %cst_19 = arith.constant dense<0.000000e+00> : vector<8x128xf32>
    %56 = tpu.matmul %55, %54, %cst_19 {dimension_numbers = #tpu.dot_dimension_numbers<[1], [0], [0], [1], [0, 0, 1, 1], [], []>} : vector<8x128xbf16>, vector<128x128xbf16>, vector<8x128xf32> -> vector<8x128xf32>
    %57 = arith.index_cast %arg0 : i32 to index
    %58 = memref.load %arg7[%57] : memref<3xf32, #tpu.memory_space<smem>>
    %59 = arith.mulf %58, %43 : f32
    %60 = vector.broadcast %59 : f32 to vector<8x128xf32>
    %61 = arith.mulf %56, %60 : vector<8x128xf32>
    %c0_20 = arith.constant 0 : index
    %c0_21 = arith.constant 0 : index
    %c0_22 = arith.constant 0 : index
    %62 = vector.load %arg3[%c0_20, %c0_21, %c0_22] : memref<1x1x128xf32, #tpu.memory_space<vmem>>, vector<1x1x128xf32>
    %63 = vector.shape_cast %62 : vector<1x1x128xf32> to vector<1x128xf32>
    %64 = vector.broadcast %63 : vector<1x128xf32> to vector<8x128xf32>
    %65 = arith.addf %61, %64 : vector<8x128xf32>
    %c0_23 = arith.constant 0 : index
    %c0_24 = arith.constant 0 : index
    %66 = vector.load %arg9[%c0_23, %c0_24] : memref<8x128xf32, #tpu.memory_space<vmem>>, vector<8x128xf32>
    tpu.vector_store %arg9[%c0_23, %c0_24], %65 {strides = array<i32>} : memref<8x128xf32, #tpu.memory_space<vmem>>, vector<8x128xf32>,
    %c2_i32 = arith.constant 2 : i32
    %67 = arith.cmpi eq, %arg0, %c2_i32 : i32
    %68 = arith.extui %67 : i1 to i32
    %c0_i32_25 = arith.constant 0 : i32
    %69 = arith.cmpi ne, %68, %c0_i32_25 : i32
    scf.if %69 {
      %c0_26 = arith.constant 0 : index
      %c0_27 = arith.constant 0 : index
      %70 = vector.load %arg8[%c0_26, %c0_27] : memref<8x128xf32, #tpu.memory_space<vmem>>, vector<8x128xf32>
      tpu.vector_store %arg8[%c0_26, %c0_27], %65 {strides = array<i32>} : memref<8x128xf32, #tpu.memory_space<vmem>>, vector<8x128xf32>,
    } else {
    }
    return
  }
  func.func @transform_0(%arg0: i32) -> (i32, i32) {
    %c0_i32 = arith.constant 0 : i32
    %c0_i32_0 = arith.constant 0 : i32
    %c0_i32_1 = arith.constant 0 : i32
    return %c0_i32, %c0_i32_0 : i32, i32
  }
  func.func @transform_1(%arg0: i32) -> (i32, i32, i32) {
    %c0_i32 = arith.constant 0 : i32
    %c0_i32_0 = arith.constant 0 : i32
    %c0_i32_1 = arith.constant 0 : i32
    return %arg0, %c0_i32, %c0_i32_0 : i32, i32, i32
  }
  func.func @transform_2(%arg0: i32) -> (i32, i32, i32) {
    %c0_i32 = arith.constant 0 : i32
    %c0_i32_0 = arith.constant 0 : i32
    %c0_i32_1 = arith.constant 0 : i32
    return %arg0, %c0_i32, %c0_i32_0 : i32, i32, i32
  }
  func.func @transform_3(%arg0: i32) -> (i32, i32, i32) {
    %c0_i32 = arith.constant 0 : i32
    %c0_i32_0 = arith.constant 0 : i32
    %c0_i32_1 = arith.constant 0 : i32
    return %arg0, %c0_i32, %c0_i32_0 : i32, i32, i32
  }
  func.func @transform_4(%arg0: i32) -> (i32, i32, i32) {
    %c0_i32 = arith.constant 0 : i32
    %c0_i32_0 = arith.constant 0 : i32
    %c0_i32_1 = arith.constant 0 : i32
    return %arg0, %c0_i32, %c0_i32_0 : i32, i32, i32
  }
  func.func @transform_5(%arg0: i32) -> i32 {
    %c0_i32 = arith.constant 0 : i32
    %c0_i32_0 = arith.constant 0 : i32
    return %c0_i32 : i32
  }
  func.func @transform_6(%arg0: i32) -> i32 {
    %c0_i32 = arith.constant 0 : i32
    %c0_i32_0 = arith.constant 0 : i32
    return %c0_i32 : i32
  }
  func.func @transform_7(%arg0: i32) -> (i32, i32) {
    %c0_i32 = arith.constant 0 : i32
    %c0_i32_0 = arith.constant 0 : i32
    %c0_i32_1 = arith.constant 0 : i32
    return %c0_i32, %c0_i32_0 : i32, i32
  }
}

</mosaic_0001>

<llo_original>
// kernel: simple_model_forward.1
$region0: #{simple_model_forward.1}
  #allocation0 [shape = 'u32[]', space=smem, size = 0x4, offset = 0x4, fixed_abs, tag = 'smem constant byte address 0x4 - core index']
  #allocation1 [shape = 'u32[72,128]{1,0:T(1,128)}', space=vmem, size = 0x9000, scoped, tag = 'internal scratch']
  #allocation2 [shape = 'f32[8,128]{1,0:T(8,128)}', space=vmem, size = 0x1000, scoped, tag = 'scratch operand']
  %s0 = inlined_call_operand.vmem [shape: f32[8,128], index: 0, kind: input, shape index: {}]
  %s1 = inlined_call_operand.hbm [shape: s8[3,128,128], index: 1, kind: input, shape index: {}]
  %s2 = inlined_call_operand.vmem [shape: f32[3,1,128], index: 2, kind: input, shape index: {}]
  %s3 = inlined_call_operand.vmem [shape: f32[3,1,128], index: 3, kind: input, shape index: {}]
  %s4 = inlined_call_operand.vmem [shape: f32[3,1,128], index: 4, kind: input, shape index: {}]
  %s5 = inlined_call_operand.vmem [shape: s32[3], index: 5, kind: input, shape index: {}]
  %s6 = inlined_call_operand.vmem [shape: f32[3], index: 6, kind: input, shape index: {}]
  %s7 = inlined_call_operand.hbm [shape: f32[8,128], index: 7, kind: output, shape index: {}]
  %s8 = sld [smem:[#allocation0]]
  $region81: #{simple_model_forward.1} parent=0
    _
  %s10 = ssub.s32 1, %s8
  %s11 = scalar_select 0, %s10, %s8
  $region1: #{simple_model_forward.1} parent=0
    #allocation3 [shape = 'u8[32768]{0}', space=vmem, size = 0x8000, scoped, tag = 'input window, operand 1']
    #allocation4 [shape = 's32[2]{0}', space=sflag, size = 0x8, scoped, tag = 'scoped memory for simple_model_forward.1']
    #allocation5 [shape = 's32[2]{0}', space=sflag, size = 0x8, scoped, tag = 'scoped memory for simple_model_forward.1']
    #allocation6 [shape = 's32[2]{0}', space=sflag, size = 0x8, scoped, tag = 'scoped memory for simple_model_forward.1']
    #allocation7 [shape = 'u8[512]{0}', space=smem, size = 0x200, scoped, tag = 'input window, operand 5, single buffered']
    #allocation8 [shape = 'u8[512]{0}', space=smem, size = 0x200, scoped, tag = 'input window, operand 6, single buffered']
    #allocation9 [shape = 's32[1]{0}', space=sflag, size = 0x4, scoped, tag = 'scoped memory for simple_model_forward.1']
    #allocation10 [shape = 'u8[4096]{0}', space=vmem, size = 0x1000, scoped, tag = 'output window, operand 0, single buffered']
    %12 = vsyncpa [#allocation4], 0
    %s13 = scalar_lea.sflag [#allocation4], 1
    %14 = vsyncpa %s13, 0
    %15 = vsyncpa [#allocation6], 0
    %16 = vsyncpa [#allocation9], 0
    %17 = vsyncpa [#allocation5], 0
    loop: start=0, step=1, limit=5
    $region2: #{simple_model_forward.1} parent=1 // loop_pre_header
      _
    $region3: #{simple_model_forward.1} parent=1 // loop_header
      %s19 = sphi 0, %s23
      %p20 = scmp.ge.s32.totalorder %s19, 5
      %s27 = sphi 0, %s27
      %s29 = sphi 0, %s27
      %s30 = sphi 0, %s29
      %s44 = sphi 0, %s30
      %s50 = sphi 0, %s52
      %s53 = sphi 0, %s50
      %s54 = sphi 0, %s53
      %s70 = sphi 0, %s54
      %s76 = sphi 0, %s78
      %s79 = sphi 0, %s76
      %s80 = sphi 0, %s79
      %s96 = sphi 0, %s80
      %s102 = sphi 0, %s104
      %s105 = sphi 0, %s102
      %s106 = sphi 0, %s105
      %s122 = sphi 0, %s106
      %s128 = sphi 0, %s130
      %s131 = sphi 0, %s128
      %s132 = sphi 0, %s131
      %s148 = sphi 0, %s132
      %s152 = sphi 0, %s152
      %s154 = sphi 0, %s152
      %s155 = sphi 0, %s154
      %s169 = sphi 0, %s155
      %s173 = sphi 0, %s173
      %s175 = sphi 0, %s173
      %s176 = sphi 0, %s175
      %s190 = sphi 0, %s176
      %s194 = sphi 0, %s194
      %s196 = sphi 0, %s194
      %s197 = sphi 0, %s196
      %s211 = sphi 0, %s197
    $region4: #{simple_model_forward.1} parent=1 // loop_header_branch
      %22 = sbr.rel (%p20) target = $region8
    $region5: #{simple_model_forward.1} parent=1 // loop_body
      %s24 = ssub.s32 %s19, 1
      %s25 = ssub.s32 %s19, 2
      %s26 = sadd.s32 %s19, 1
      %s28 = sadd.s32 %s27, 1
      %p31 = scmp.eq.s32.totalorder %s19, 2
      %p32 = scmp.ne.s32.totalorder %s27, %s29
      %p33 = scmp.eq.s32.totalorder %s19, 0
      %p34 = por %p32, %p33
      %p35 = scmp.ne.s32.totalorder %s27, %s29
      %p36 = scmp.eq.s32.totalorder %s24, 2
      %p37 = por %p35, %p36
      %p38 = scmp.ne.s32.totalorder %s29, %s30
      %p39 = scmp.eq.s32.totalorder %s24, 0
      %p40 = por %p38, %p39
      %p41 = scmp.ne.s32.totalorder %s29, %s30
      %p42 = scmp.eq.s32.totalorder %s25, 2
      %p43 = por %p41, %p42
      %p45 = scmp.ne.s32.totalorder %s30, %s44
      %p46 = scmp.eq.s32.totalorder %s25, 0
      %p47 = por %p45, %p46
      %s48 = ssub.s32 %s19, %s26
      %p49 = scmp.eq.s32.totalorder %s48, 0
      %s51 = sadd.s32 %s50, 1
      %s52 = scalar_select %p49, %s50, %s51
      %p55 = pneg %p49
      %p56 = scmp.eq.s32.totalorder %s19, 2
      %p57 = por %p55, %p56
      %p58 = scmp.ne.s32.totalorder %s50, %s53
      %p59 = scmp.eq.s32.totalorder %s19, 0
      %p60 = por %p58, %p59
      %p61 = scmp.ne.s32.totalorder %s50, %s53
      %p62 = scmp.eq.s32.totalorder %s24, 2
      %p63 = por %p61, %p62
      %p64 = scmp.ne.s32.totalorder %s53, %s54
      %p65 = scmp.eq.s32.totalorder %s24, 0
      %p66 = por %p64, %p65
      %p67 = scmp.ne.s32.totalorder %s53, %s54
      %p68 = scmp.eq.s32.totalorder %s25, 2
      %p69 = por %p67, %p68
      %p71 = scmp.ne.s32.totalorder %s54, %s70
      %p72 = scmp.eq.s32.totalorder %s25, 0
      %p73 = por %p71, %p72
      %s74 = ssub.s32 %s19, %s26
      %p75 = scmp.eq.s32.totalorder %s74, 0
      %s77 = sadd.s32 %s76, 1
      %s78 = scalar_select %p75, %s76, %s77
      %p81 = pneg %p75
      %p82 = scmp.eq.s32.totalorder %s19, 2
      %p83 = por %p81, %p82
      %p84 = scmp.ne.s32.totalorder %s76, %s79
      %p85 = scmp.eq.s32.totalorder %s19, 0
      %p86 = por %p84, %p85
      %p87 = scmp.ne.s32.totalorder %s76, %s79
      %p88 = scmp.eq.s32.totalorder %s24, 2
      %p89 = por %p87, %p88
      %p90 = scmp.ne.s32.totalorder %s79, %s80
      %p91 = scmp.eq.s32.totalorder %s24, 0
      %p92 = por %p90, %p91
      %p93 = scmp.ne.s32.totalorder %s79, %s80
      %p94 = scmp.eq.s32.totalorder %s25, 2
      %p95 = por %p93, %p94
      %p97 = scmp.ne.s32.totalorder %s80, %s96
      %p98 = scmp.eq.s32.totalorder %s25, 0
      %p99 = por %p97, %p98
      %s100 = ssub.s32 %s19, %s26
      %p101 = scmp.eq.s32.totalorder %s100, 0
      %s103 = sadd.s32 %s102, 1
      %s104 = scalar_select %p101, %s102, %s103
      %p107 = pneg %p101
      %p108 = scmp.eq.s32.totalorder %s19, 2
      %p109 = por %p107, %p108
      %p110 = scmp.ne.s32.totalorder %s102, %s105
      %p111 = scmp.eq.s32.totalorder %s19, 0
      %p112 = por %p110, %p111
      %p113 = scmp.ne.s32.totalorder %s102, %s105
      %p114 = scmp.eq.s32.totalorder %s24, 2
      %p115 = por %p113, %p114
      %p116 = scmp.ne.s32.totalorder %s105, %s106
      %p117 = scmp.eq.s32.totalorder %s24, 0
      %p118 = por %p116, %p117
      %p119 = scmp.ne.s32.totalorder %s105, %s106
      %p120 = scmp.eq.s32.totalorder %s25, 2
      %p121 = por %p119, %p120
      %p123 = scmp.ne.s32.totalorder %s106, %s122
      %p124 = scmp.eq.s32.totalorder %s25, 0
      %p125 = por %p123, %p124
      %s126 = ssub.s32 %s19, %s26
      %p127 = scmp.eq.s32.totalorder %s126, 0
      %s129 = sadd.s32 %s128, 1
      %s130 = scalar_select %p127, %s128, %s129
      %p133 = pneg %p127
      %p134 = scmp.eq.s32.totalorder %s19, 2
      %p135 = por %p133, %p134
      %p136 = scmp.ne.s32.totalorder %s128, %s131
      %p137 = scmp.eq.s32.totalorder %s19, 0
      %p138 = por %p136, %p137
      %p139 = scmp.ne.s32.totalorder %s128, %s131
      %p140 = scmp.eq.s32.totalorder %s24, 2
      %p141 = por %p139, %p140
      %p142 = scmp.ne.s32.totalorder %s131, %s132
      %p143 = scmp.eq.s32.totalorder %s24, 0
      %p144 = por %p142, %p143
      %p145 = scmp.ne.s32.totalorder %s131, %s132
      %p146 = scmp.eq.s32.totalorder %s25, 2
      %p147 = por %p145, %p146
      %p149 = scmp.ne.s32.totalorder %s132, %s148
      %p150 = scmp.eq.s32.totalorder %s25, 0
      %p151 = por %p149, %p150
      %s153 = sadd.s32 %s152, 1
      %p156 = scmp.eq.s32.totalorder %s19, 2
      %p157 = scmp.ne.s32.totalorder %s152, %s154
      %p158 = scmp.eq.s32.totalorder %s19, 0
      %p159 = por %p157, %p158
      %p160 = scmp.ne.s32.totalorder %s152, %s154
      %p161 = scmp.eq.s32.totalorder %s24, 2
      %p162 = por %p160, %p161
      %p163 = scmp.ne.s32.totalorder %s154, %s155
      %p164 = scmp.eq.s32.totalorder %s24, 0
      %p165 = por %p163, %p164
      %p166 = scmp.ne.s32.totalorder %s154, %s155
      %p167 = scmp.eq.s32.totalorder %s25, 2
      %p168 = por %p166, %p167
      %p170 = scmp.ne.s32.totalorder %s155, %s169
      %p171 = scmp.eq.s32.totalorder %s25, 0
      %p172 = por %p170, %p171
      %s174 = sadd.s32 %s173, 1
      %p177 = scmp.eq.s32.totalorder %s19, 2
      %p178 = scmp.ne.s32.totalorder %s173, %s175
      %p179 = scmp.eq.s32.totalorder %s19, 0
      %p180 = por %p178, %p179
      %p181 = scmp.ne.s32.totalorder %s173, %s175
      %p182 = scmp.eq.s32.totalorder %s24, 2
      %p183 = por %p181, %p182
      %p184 = scmp.ne.s32.totalorder %s175, %s176
      %p185 = scmp.eq.s32.totalorder %s24, 0
      %p186 = por %p184, %p185
      %p187 = scmp.ne.s32.totalorder %s175, %s176
      %p188 = scmp.eq.s32.totalorder %s25, 2
      %p189 = por %p187, %p188
      %p191 = scmp.ne.s32.totalorder %s176, %s190
      %p192 = scmp.eq.s32.totalorder %s25, 0
      %p193 = por %p191, %p192
      %s195 = sadd.s32 %s194, 1
      %p198 = scmp.eq.s32.totalorder %s19, 2
      %p199 = scmp.ne.s32.totalorder %s194, %s196
      %p200 = scmp.eq.s32.totalorder %s19, 0
      %p201 = por %p199, %p200
      %p202 = scmp.ne.s32.totalorder %s194, %s196
      %p203 = scmp.eq.s32.totalorder %s24, 2
      %p204 = por %p202, %p203
      %p205 = scmp.ne.s32.totalorder %s196, %s197
      %p206 = scmp.eq.s32.totalorder %s24, 0
      %p207 = por %p205, %p206
      %p208 = scmp.ne.s32.totalorder %s196, %s197
      %p209 = scmp.eq.s32.totalorder %s25, 2
      %p210 = por %p208, %p209
      %p212 = scmp.ne.s32.totalorder %s197, %s211
      %p213 = scmp.eq.s32.totalorder %s25, 0
      %p214 = por %p212, %p213
      %p215 = scmp.le.s32.totalorder 1, %s19
      %p216 = scmp.lt.s32.totalorder %s19, 4
      %p217 = pnand %p215, %p216
      %p218 = pneg %p217
      // Predicated region
      $region9: #{simple_model_forward.1} parent=5 // pred_check
        _
      $region10: #{simple_model_forward.1} parent=5 // pred_check_branch
        %220 = sbr.rel (%p217) target = $region12
      $region11: #{simple_model_forward.1} parent=5 // pred_region
        %s221 = ssub.s32 %s19, 1
        // Predicated region
        $region13: #{simple_model_forward.1} parent=11 // pred_check
          %p222 = pneg %p40
        $region14: #{simple_model_forward.1} parent=11 // pred_check_branch
          %224 = sbr.rel (%p222) target = $region16
        $region15: #{simple_model_forward.1} parent=11 // pred_region
          _
        $region16: #{simple_model_forward.1} parent=11 // pred_fallthru
          _
        // Predicated region
        $region17: #{simple_model_forward.1} parent=11 // pred_check
          %p225 = pneg %p165
        $region18: #{simple_model_forward.1} parent=11 // pred_check_branch
          %227 = sbr.rel (%p225) target = $region20
        $region19: #{simple_model_forward.1} parent=11 // pred_region
          %229 = vsyncadd [#allocation6], 0
          %s231 = sshll.u32 %s5, 4
          %s232 = int_to_ptr.vmem [resolvable:$true] %s231
          %234 = dma.vmem_to_smem %s232, 16, [#allocation7], [#allocation6]
        $region20: #{simple_model_forward.1} parent=11 // pred_fallthru
          _
        // Predicated region
        $region21: #{simple_model_forward.1} parent=11 // pred_check
          %p235 = pneg %p186
        $region22: #{simple_model_forward.1} parent=11 // pred_check_branch
          %237 = sbr.rel (%p235) target = $region24
        $region23: #{simple_model_forward.1} parent=11 // pred_region
          %239 = vsyncadd [#allocation9], 0
          %s241 = sshll.u32 %s6, 4
          %s242 = int_to_ptr.vmem [resolvable:$true] %s241
          %244 = dma.vmem_to_smem %s242, 16, [#allocation8], [#allocation9]
        $region24: #{simple_model_forward.1} parent=11 // pred_fallthru
          _
      $region12: #{simple_model_forward.1} parent=5 // pred_fallthru
        _
      %p245 = scmp.lt.s32.totalorder %s19, 3
      // Predicated region
      $region25: #{simple_model_forward.1} parent=5 // pred_check
        %p246 = pneg %p245
      $region26: #{simple_model_forward.1} parent=5 // pred_check_branch
        %248 = sbr.rel (%p246) target = $region28
      $region27: #{simple_model_forward.1} parent=5 // pred_region
        // Predicated region
        $region29: #{simple_model_forward.1} parent=27 // pred_check
          %p249 = pneg %p60
        $region30: #{simple_model_forward.1} parent=27 // pred_check_branch
          %251 = sbr.rel (%p249) target = $region32
        $region31: #{simple_model_forward.1} parent=27 // pred_region
          %s252 = sand.u32 %s50, 1
          %s253 = scalar_lea.sflag [#allocation4], %s252
          %s254 = sand.u32 %s50, 1
          %s255 = smul.addr %s254, 32
          %s256 = scalar_lea.vmem [#allocation3], %s255
          %258 = vsyncadd %s253, 0
          %s259 = smul.addr %s19, 4
          %s260 = smul.addr %s259, 8
          %s261 = scalar_lea.hbm %s1, %s260
          %s262 = sshll.u32 %s261, 4
          %s263 = int_to_ptr.hbm [resolvable:$true] %s262
          %s264 = sshll.u32 %s256, 4
          %s265 = int_to_ptr.vmem [resolvable:$true] %s264
          %270 = dma.hbm_to_vmem [thread:$0]  %s263, 512, %s265, %s253, 128, 128, 8
        $region32: #{simple_model_forward.1} parent=27 // pred_fallthru
          _
        // Predicated region
        $region33: #{simple_model_forward.1} parent=27 // pred_check
          %p271 = pneg %p86
        $region34: #{simple_model_forward.1} parent=27 // pred_check_branch
          %273 = sbr.rel (%p271) target = $region36
        $region35: #{simple_model_forward.1} parent=27 // pred_region
          %p274 = scmp.lt.s32.totalorder %s19, 2
          %s275 = scalar_select %p274, %s19, 2
          %s276 = scalar_lea.vmem %s2, %s275
        $region36: #{simple_model_forward.1} parent=27 // pred_fallthru
          _
        // Predicated region
        $region37: #{simple_model_forward.1} parent=27 // pred_check
          %p277 = pneg %p112
        $region38: #{simple_model_forward.1} parent=27 // pred_check_branch
          %279 = sbr.rel (%p277) target = $region40
        $region39: #{simple_model_forward.1} parent=27 // pred_region
          %p280 = scmp.lt.s32.totalorder %s19, 2
          %s281 = scalar_select %p280, %s19, 2
          %s282 = scalar_lea.vmem %s3, %s281
        $region40: #{simple_model_forward.1} parent=27 // pred_fallthru
          _
        // Predicated region
        $region41: #{simple_model_forward.1} parent=27 // pred_check
          %p283 = pneg %p138
        $region42: #{simple_model_forward.1} parent=27 // pred_check_branch
          %285 = sbr.rel (%p283) target = $region44
        $region43: #{simple_model_forward.1} parent=27 // pred_region
          %p286 = scmp.lt.s32.totalorder %s19, 2
          %s287 = scalar_select %p286, %s19, 2
          %s288 = scalar_lea.vmem %s4, %s287
        $region44: #{simple_model_forward.1} parent=27 // pred_fallthru
          _
      $region28: #{simple_model_forward.1} parent=5 // pred_fallthru
        _
      %p289 = scmp.le.s32.totalorder 1, %s19
      %p290 = scmp.lt.s32.totalorder %s19, 4
      %p291 = pnand %p289, %p290
      %p292 = pneg %p291
      // Predicated region
      $region45: #{simple_model_forward.1} parent=5 // pred_check
        _
      $region46: #{simple_model_forward.1} parent=5 // pred_check_branch
        %294 = sbr.rel (%p291) target = $region48
      $region47: #{simple_model_forward.1} parent=5 // pred_region
        %s295 = ssub.s32 %s19, 1
        %s296 = sand.u32 %s53, 1
        %s297 = scalar_lea.sflag [#allocation4], %s296
        %s298 = sand.u32 %s53, 1
        %s299 = smul.addr %s298, 32
        %s300 = scalar_lea.vmem [#allocation3], %s299
        // Predicated region
        $region49: #{simple_model_forward.1} parent=47 // pred_check
          %p301 = pneg %p66
        $region50: #{simple_model_forward.1} parent=47 // pred_check_branch
          %303 = sbr.rel (%p301) target = $region52
        $region51: #{simple_model_forward.1} parent=47 // pred_region
          %305 = dma.done %s297, 512
        $region52: #{simple_model_forward.1} parent=47 // pred_fallthru
          _
        // Predicated region
        $region53: #{simple_model_forward.1} parent=47 // pred_check
          %p306 = pneg %p165
        $region54: #{simple_model_forward.1} parent=47 // pred_check_branch
          %308 = sbr.rel (%p306) target = $region56
        $region55: #{simple_model_forward.1} parent=47 // pred_region
          %310 = dma.done [#allocation6], 16
        $region56: #{simple_model_forward.1} parent=47 // pred_fallthru
          _
        // Predicated region
        $region57: #{simple_model_forward.1} parent=47 // pred_check
          %p311 = pneg %p186
        $region58: #{simple_model_forward.1} parent=47 // pred_check_branch
          %313 = sbr.rel (%p311) target = $region60
        $region59: #{simple_model_forward.1} parent=47 // pred_region
          %315 = dma.done [#allocation9], 16
        $region60: #{simple_model_forward.1} parent=47 // pred_fallthru
          _
        %316 = sfence
        %p317 = pneg %p40
        %p318 = pneg %p37
        %s319 = sand.u32 %s53, 1
        %s320 = scalar_lea.sflag [#allocation4], %s319
        %s321 = sand.u32 %s53, 1
        %s322 = smul.addr %s321, 32
        %s323 = scalar_lea.vmem [#allocation3], %s322
        %p324 = pneg %p66
        %p325 = pneg %p63
        %p326 = scmp.lt.s32.totalorder %s24, 2
        %s327 = scalar_select %p326, %s24, 2
        %s328 = scalar_lea.vmem %s2, %s327
        %p329 = pneg %p92
        %p330 = pneg %p89
        %p331 = scmp.lt.s32.totalorder %s24, 2
        %s332 = scalar_select %p331, %s24, 2
        %s333 = scalar_lea.vmem %s3, %s332
        %p334 = pneg %p118
        %p335 = pneg %p115
        %p336 = scmp.lt.s32.totalorder %s24, 2
        %s337 = scalar_select %p336, %s24, 2
        %s338 = scalar_lea.vmem %s4, %s337
        %p339 = pneg %p144
        %p340 = pneg %p141
        %p341 = pneg %p165
        %p342 = pneg %p162
        %p343 = pneg %p186
        %p344 = pneg %p183
        %p345 = pneg %p207
        %p346 = pneg %p204
        %p347 = scmp.lt.s32.totalorder %s24, 2
        %s348 = scalar_select %p347, %s24, 2
        %s349 = scalar_lea.vmem %s2, %s348
        %p350 = scmp.lt.s32.totalorder %s24, 2
        %s351 = scalar_select %p350, %s24, 2
        %s352 = scalar_lea.vmem %s3, %s351
        %p353 = scmp.lt.s32.totalorder %s24, 2
        %s354 = scalar_select %p353, %s24, 2
        %s355 = scalar_lea.vmem %s4, %s354
        %p356 = scmp.eq.s32.totalorder %s24, 0
        // Predicated region
        $region61: #{simple_model_forward.1} parent=47 // pred_check
          %p357 = pneg %p356
        $region62: #{simple_model_forward.1} parent=47 // pred_check_branch
          %359 = sbr.rel (%p357) target = $region64
        $region63: #{simple_model_forward.1} parent=47 // pred_region
          %v360 = vld [vmem:[%s0] sm:$0xff]
          %361 = vst [vmem:[#allocation2] sm:$0xff] %v360
        $region64: #{simple_model_forward.1} parent=47 // pred_fallthru
          _
        %v362 = vld [vmem:[#allocation2] sm:$0xff]
        %s363 = sld [smem:[#allocation7 + %s24]]
        %s364 = scvt.s32.f32 %s363
        %v365 = vstv %s364
        %v366 = vrcp.pop %v365
        %v367 = vmul.f32 %v365, %v366
        %v368 = vsub.f32 1.0, %v367
        %v369 = vmul.f32 %v366, %v368
        %v370 = vadd.f32 %v366, %v369
        %vm371 = vweird.f32 %v365
        %vm372 = vweird.f32 %v366
        %vm373 = vmor %vm371, %vm372
        %v374 = vsel %vm373, %v366, %v370
        %v375 = vand.u32 2147483647, %v365
        %vm376 = vcmp.eq.f32.partialorder %v375, 8.507059e+37
        %v377 = vand.u32 %v365, 2147483648
        %v378 = vor.u32 1.1754944e-38, %v377
        %v379 = vsel %vm376, %v378, %v374
        %s380 = vtos %v379
        %v381 = vlaneseq
        %v382 = vand.u32 %v381, 127
        %v383 = vstv %s363
        %vm384 = vcmp.lt.s32.totalorder %v382, %v383
        %v385 = vsel %vm384, 1, 0
        %v386 = vcvt.s32.f32 %v385
        %387 = vadd.xlane.f32.xlu0 %v362
        %v388 = vpop.xlane.xlu0 %387
        %v389 = vstv %s380
        %v390 = vmul.f32 %v388, %v389
        %v391 = vsub.f32 %v362, %v390
        %v392 = vmul.f32 %v391, %v386
        %v393 = vmul.f32 %v392, %v392
        %394 = vadd.xlane.f32.xlu0 %v393
        %v395 = vpop.xlane.xlu0 %394
        %v396 = vmul.f32 %v395, %v389
        %v397 = vadd.f32 %v396, 1e-05
        %v398 = vrsqrt.pop %v397
        %v399 = vmul.f32 %v398, %v397
        %v400 = vmul.f32 %v399, %v398
        %v401 = vmul.f32 0.5, %v400
        %v402 = vsub.f32 1.5, %v401
        %v403 = vmul.f32 %v398, %v402
        %vm404 = vweird.f32 %v397
        %vm405 = vweird.f32 %v398
        %vm406 = vmor %vm404, %vm405
        %v407 = vsel %vm406, %v398, %v403
        %v408 = vmul.f32 %v392, %v407
        %v409 = vld [vmem:[%s352] sm:$0x1]
        %v411 = vperm.slane %v409, 0
        %v413 = vmul.f32 %v408, %v411
        %v414 = vld [vmem:[%s355] sm:$0x1]
        %v416 = vperm.slane %v414, 0
        %v418 = vadd.f32 %v413, %v416
        %v419 = vand.u32 2147483647, %v418
        %420 = vmax.xlane.f32.xlu0 %v419
        %v421 = vpop.xlane.xlu0 %420
        %v422 = vrot.slane %v421, 4
        %v423 = vmax.f32 %v421, %v422
        %v424 = vrot.slane %v423, 2
        %v425 = vmax.f32 %v423, %v424
        %v426 = vrot.slane %v425, 1
        %v427 = vmax.f32 %v425, %v426
        %s428 = vtos %v427
        %s429 = smax.f32 %s428, 1e-09
        %v430 = vstv %s429
        %v431 = vrcp.pop %v430
        %v432 = vmul.f32 %v430, %v431
        %v433 = vsub.f32 1.0, %v432
        %v434 = vmul.f32 %v431, %v433
        %v435 = vadd.f32 %v431, %v434
        %vm436 = vweird.f32 %v430
        %vm437 = vweird.f32 %v431
        %vm438 = vmor %vm436, %vm437
        %v439 = vsel %vm438, %v431, %v435
        %v440 = vand.u32 2147483647, %v430
        %vm441 = vcmp.eq.f32.partialorder %v440, 8.507059e+37
        %v442 = vand.u32 %v430, 2147483648
        %v443 = vor.u32 1.1754944e-38, %v442
        %v444 = vsel %vm441, %v443, %v439
        %s445 = vtos %v444
        %s446 = smul.f32 128.0, %s445
        %v447 = vstv %s446
        %v448 = vmul.f32 %v418, %v447
        %v449 = vmax.f32 %v448, -128.0
        %v450 = vmin.f32 %v449, 128.0
        %v451 = vld [vmem:[%s300] sm:$0xff]
        %v452 = vld [vmem:[%s300 + $0x8] sm:$0xff]
        %v453 = vld [vmem:[%s300 + $0x10] sm:$0xff]
        %v454 = vld [vmem:[%s300 + $0x18] sm:$0xff]
        %v455 = vunpack.c.0.s8 %v451
        %v456 = vunpack.c.1.s8 %v451
        %v457 = vunpack.c.2.s8 %v451
        %v458 = vunpack.c.3.s8 %v451
        %v459 = vunpack.c.0.s8 %v452
        %v460 = vunpack.c.1.s8 %v452
        %v461 = vunpack.c.2.s8 %v452
        %v462 = vunpack.c.3.s8 %v452
        %v463 = vunpack.c.0.s8 %v453
        %v464 = vunpack.c.1.s8 %v453
        %v465 = vunpack.c.2.s8 %v453
        %v466 = vunpack.c.3.s8 %v453
        %v467 = vunpack.c.0.s8 %v454
        %v468 = vunpack.c.1.s8 %v454
        %v469 = vunpack.c.2.s8 %v454
        %v470 = vunpack.c.3.s8 %v454
        %v471 = vcvt.s32.f32 %v455
        %v472 = vcvt.s32.f32 %v456
        %v473 = vcvt.s32.f32 %v457
        %v474 = vcvt.s32.f32 %v458
        %v475 = vcvt.s32.f32 %v459
        %v476 = vcvt.s32.f32 %v460
        %v477 = vcvt.s32.f32 %v461
        %v478 = vcvt.s32.f32 %v462
        %v479 = vcvt.s32.f32 %v463
        %v480 = vcvt.s32.f32 %v464
        %v481 = vcvt.s32.f32 %v465
        %v482 = vcvt.s32.f32 %v466
        %v483 = vcvt.s32.f32 %v467
        %v484 = vcvt.s32.f32 %v468
        %v485 = vcvt.s32.f32 %v469
        %v486 = vcvt.s32.f32 %v470
        %v487 = vpack.c.bf16 %v472, %v471
        %v488 = vpack.c.bf16 %v474, %v473
        %v489 = vpack.c.bf16 %v476, %v475
        %v490 = vpack.c.bf16 %v478, %v477
        %v491 = vpack.c.bf16 %v480, %v479
        %v492 = vpack.c.bf16 %v482, %v481
        %v493 = vpack.c.bf16 %v484, %v483
        %v494 = vpack.c.bf16 %v486, %v485
        %v495 = vpack.c.bf16 %v450, %v450
        %496 = vmatpush.bf16.msra.mxu0 %v494
        %497 = vmatpush.bf16.msra.mxu0 %v493
        %498 = vmatpush.bf16.msra.mxu0 %v492
        %499 = vmatpush.bf16.msra.mxu0 %v491
        %500 = vmatpush.bf16.msra.mxu0 %v490
        %501 = vmatpush.bf16.msra.mxu0 %v489
        %502 = vmatpush.bf16.msra.mxu0 %v488
        %503 = vmatpush.bf16.msra.mxu0 %v487
        %504 = vmatmul.bf16.gmra.mxu0 %v495
        %v505 = vpop.f32.mrf.mxu0
        %v506 = vadd.f32 0.0, %v505
        %v507 = vpop.f32.mrf.mxu0
        %508 = vdwg.mxu0
        %s509 = sld [smem:[#allocation8 + %s24]]
        %s510 = smul.f32 %s509, %s428
        %v511 = vstv %s510
        %v512 = vmul.f32 %v506, %v511
        %v513 = vld [vmem:[%s349] sm:$0x1]
        %v515 = vperm.slane %v513, 0
        %v517 = vadd.f32 %v512, %v515
        %518 = vst [vmem:[#allocation2] sm:$0xff] %v517
        %p519 = scmp.eq.s32.totalorder %s24, 2
        // Predicated region
        $region65: #{simple_model_forward.1} parent=47 // pred_check
          %p520 = pneg %p519
        $region66: #{simple_model_forward.1} parent=47 // pred_check_branch
          %522 = sbr.rel (%p520) target = $region68
        $region67: #{simple_model_forward.1} parent=47 // pred_region
          %523 = vst [vmem:[#allocation10] sm:$0xff] %v517
        $region68: #{simple_model_forward.1} parent=47 // pred_fallthru
          _
        // Predicated region
        $region69: #{simple_model_forward.1} parent=47 // pred_check
          %p524 = pneg %p204
        $region70: #{simple_model_forward.1} parent=47 // pred_check_branch
          %526 = sbr.rel (%p524) target = $region72
        $region71: #{simple_model_forward.1} parent=47 // pred_region
          %528 = vsyncadd [#allocation5], 0
          %s530 = sshll.u32 [#allocation10], 4
          %s531 = int_to_ptr.vmem [resolvable:$true] %s530
          %s532 = sshll.u32 %s7, 4
          %s533 = int_to_ptr.hbm [resolvable:$true] %s532
          %535 = dma.vmem_to_hbm [thread:$0]  %s531, 128, %s533, [#allocation5]
        $region72: #{simple_model_forward.1} parent=47 // pred_fallthru
          _
        // Predicated region
        $region73: #{simple_model_forward.1} parent=47 // pred_check
          %p536 = pneg %p204
        $region74: #{simple_model_forward.1} parent=47 // pred_check_branch
          %538 = sbr.rel (%p536) target = $region76
        $region75: #{simple_model_forward.1} parent=47 // pred_region
          %540 = dma.done [#allocation5], 128
        $region76: #{simple_model_forward.1} parent=47 // pred_fallthru
          _
      $region48: #{simple_model_forward.1} parent=5 // pred_fallthru
        _
      %p541 = scmp.le.s32.totalorder 2, %s19
      // Predicated region
      $region77: #{simple_model_forward.1} parent=5 // pred_check
        %p542 = pneg %p541
      $region78: #{simple_model_forward.1} parent=5 // pred_check_branch
        %544 = sbr.rel (%p542) target = $region80
      $region79: #{simple_model_forward.1} parent=5 // pred_region
        %s545 = ssub.s32 %s19, 2
      $region80: #{simple_model_forward.1} parent=5 // pred_fallthru
        _
    $region6: #{simple_model_forward.1} parent=1 // loop_footer
      %s23 = sadd.s32 1, %s19
    $region7: #{simple_model_forward.1} parent=1 // loop_footer_branch
      %18 = sbr.rel target = $region3
    $region8: #{simple_model_forward.1} parent=1 // loop_exit
      _
    %546 = vsyncpa [#allocation4], 1
    %s547 = scalar_lea.sflag [#allocation4], 1
    %548 = vsyncpa %s547, 1
    %549 = vsyncpa [#allocation5], 1
    %s550 = scalar_lea.sflag [#allocation5], 1
    %551 = vsyncpa %s550, 1
    %552 = vsyncpa [#allocation6], 1
    %s553 = scalar_lea.sflag [#allocation6], 1
    %554 = vsyncpa %s553, 1
    %555 = vsyncpa [#allocation9], 1

</llo_original>
